<compile_context>
chip_gen: v7x
topology: tpu7x:2x2x1
jax: 0.10.0
libtpu: 0.0.40
codegen_flags: <defaults>
</compile_context>

<pallas_src>
import functools

import jax
import jax.numpy as jnp
from jax.experimental import pallas as pl
from jax.experimental.pallas import tpu as pltpu

ALPHA = 4.0
NSPLIT = 2  # leading "parallel" grid axis: sharded across the 2 TCs on v7x.


def _rdrop_kernel(y_pred_ref, y_true_ref, out_ref, acc_ref, *, inv_batch, kl_scale):
    j = pl.program_id(1)

    @pl.when(j == 0)
    def _init():
        acc_ref[0] = jnp.float32(0.0)

    logits = y_pred_ref[...].astype(jnp.float32)      # [TB, C]
    labels = y_true_ref[...]                          # [TB, 1] int32 (-1 == padding)
    tb, c = logits.shape

    # ---- shared softmax pieces: one exp pass, reuse e for the probabilities ----
    m = jnp.max(logits, axis=-1, keepdims=True)
    z = logits - m
    e = jnp.exp(z)                                    # only TB*C transcendentals
    sum_e = jnp.sum(e, axis=-1, keepdims=True)        # [TB, 1]
    logp = z - jnp.log(sum_e)                         # [TB, C]
    p = e * pl.reciprocal(sum_e)                      # exact; no second exp pass

    # ---- supervised CE term, pre-scaled by 1/batch (padded rows: label -1 -> 0) --
    col = jax.lax.broadcasted_iota(jnp.int32, (tb, c), 1)
    ce_elem = jnp.where(col == labels, logp, 0.0) * (-inv_batch)

    # ---- adjacent-pair R-Drop term via sublane rotate (no stride-2 relayout) ----
    # For pair (2k, 2k+1): (p1 - p2) * (logp1 - logp2) == kl1 + kl2 elementwise.
    # Roll by one row so each row sees a neighbour, then keep only rows whose
    # rolled neighbour is their pair partner (row XOR 1).  The mask is built from
    # a rolled [TB,1] iota (robust to the rotate-direction convention) and
    # broadcast along lanes, so the only full-tile extra work is the two data
    # rolls + diffs.  Each pair is counted once for TB > 2 (twice for TB == 2,
    # handled by the pair_scale folded into kl_scale).
    rolled_p = pltpu.roll(p, shift=tb - 1, axis=0)
    rolled_lp = pltpu.roll(logp, shift=tb - 1, axis=0)
    row = jax.lax.broadcasted_iota(jnp.int32, (tb, 1), 0)
    nbr = pltpu.roll(row, shift=tb - 1, axis=0)
    partner = row + 1 - 2 * (row & 1)                 # 2k <-> 2k+1
    pair_mask = jnp.where(nbr == partner, kl_scale, 0.0)   # [TB,1], pre-scaled
    kl_elem = pair_mask * ((p - rolled_p) * (logp - rolled_lp))

    # Single fused full-tile reduction (pre-scaled partials -> good precision).
    acc_ref[0] += jnp.sum(ce_elem + kl_elem)

    @pl.when(j == pl.num_programs(1) - 1)
    def _finalize():
        out_ref[...] = jnp.full(out_ref.shape, acc_ref[0], dtype=jnp.float32)


def _round_up(x, m):
    return ((x + m - 1) // m) * m


def _choose_block_rows(batch, num_classes, itemsize, nsplit):
    """Row tile: ~4 MiB working-set budget = double-buffered wire tile
    (2*tb*C*itemsize) + ~8 f32 temporaries (logits, e, logp, p, two rolled
    copies, diffs) per tile, rounded to 16 rows (bf16 sublane packing; 32 for
    1-byte dtypes) and capped at what a single core-split actually needs."""
    budget = 4 * 1024 * 1024
    per_row = num_classes * (2 * itemsize + 8 * 4)
    mult = 32 if itemsize == 1 else 16
    tb = max(mult, (budget // per_row) // mult * mult)
    need = _round_up(pl.cdiv(batch, nsplit), mult)    # avoid excess padding
    return max(mult, min(tb, need, 2048))


def rdrop_loss(y_pred, y_true, alpha=ALPHA, block_rows=None):
    B, C = y_pred.shape
    assert B % 2 == 0, "adjacent pairing needs an even batch"
    itemsize = jnp.dtype(y_pred.dtype).itemsize

    if block_rows is None:
        tb = _choose_block_rows(B, C, itemsize, NSPLIT)
    else:
        assert block_rows % 8 == 0, "block_rows must be a multiple of 8"
        tb = block_rows

    bps = pl.cdiv(B, NSPLIT * tb)            # blocks per core-split
    B_pad = NSPLIT * bps * tb

    y_true_i = y_true.astype(jnp.int32)
    if B_pad != B:
        # Padded rows: zero logits (identical within each padded pair -> KL 0)
        # and label -1 (never matches any class column -> CE 0).
        y_pred = jnp.pad(y_pred, ((0, B_pad - B), (0, 0)))
        y_true_i = jnp.pad(y_true_i, (0, B_pad - B), constant_values=-1)
    y_true_2d = y_true_i.reshape(B_pad, 1)

    n_kl = (B // 2) * C
    pair_scale = 1.0 if tb > 2 else 0.5      # tb == 2: roll double-counts the pair
    kernel = functools.partial(
        _rdrop_kernel,
        inv_batch=1.0 / float(B),
        kl_scale=float(pair_scale * float(alpha) / (4.0 * n_kl)),
    )

    idx = lambda i, j: (i * bps + j, 0)
    cost = pl.CostEstimate(
        flops=int(14 * B_pad * C),
        transcendentals=int(B_pad * C + 2 * B_pad),
        bytes_accessed=int(B_pad * C * itemsize + B_pad * 4 + NSPLIT * 8 * 128 * 4),
    )

    out = pl.pallas_call(
        kernel,
        out_shape=jax.ShapeDtypeStruct((NSPLIT * 8, 128), jnp.float32),
        grid_spec=pltpu.PrefetchScalarGridSpec(
            num_scalar_prefetch=0,
            grid=(NSPLIT, bps),
            in_specs=[
                pl.BlockSpec((tb, C), idx),   # logits tile (double-buffered VMEM)
                pl.BlockSpec((tb, 1), idx),   # labels tile
            ],
            out_specs=pl.BlockSpec((8, 128), lambda i, j: (i, 0)),   # per-split partial
            scratch_shapes=[pltpu.SMEM((1,), jnp.float32)],
        ),
        compiler_params=pltpu.CompilerParams(
            dimension_semantics=("parallel", "arbitrary"),
            vmem_limit_bytes=32 * 1024 * 1024,
        ),
        cost_estimate=cost,
    )(y_pred, y_true_2d)

    # One partial per core-split (block row i*8); sum them in the wrapper.
    return jnp.sum(out[0::8, 0])


def rdrop_loss_ref(y_pred, y_true, alpha=ALPHA):
    """Pure-JAX reference mirroring the PyTorch forward."""
    logits = y_pred.astype(jnp.float32)
    logp = jax.nn.log_softmax(logits, axis=-1)
    B = logits.shape[0]
    loss_sup = -jnp.mean(logp[jnp.arange(B), y_true])
    p1, p2 = logits[1::2], logits[0::2]
    lp1, lp2 = jax.nn.log_softmax(p1, -1), jax.nn.log_softmax(p2, -1)
    sp1, sp2 = jax.nn.softmax(p1, -1), jax.nn.softmax(p2, -1)
    kl1 = sp2 * (lp2 - lp1)
    kl2 = sp1 * (lp1 - lp2)
    return loss_sup + jnp.mean(kl1 + kl2) / 4.0 * alpha


if __name__ == "__main__":
    key = jax.random.PRNGKey(0)
    k1, k2, k3, k4 = jax.random.split(key, 4)

    # Case 1: small even batch; exercises the padding path (B=8 -> padded tiles).
    B1, C1 = 8, 32
    y_pred1 = jax.random.normal(k1, (B1, C1), dtype=jnp.float32)
    y_true1 = jax.random.randint(k2, (B1,), 0, C1, dtype=jnp.int32)
    loss1 = rdrop_loss(y_pred1, y_true1)
    jax.block_until_ready(loss1)
    ref1 = rdrop_loss_ref(y_pred1, y_true1)
    assert jnp.allclose(loss1, ref1, rtol=1e-5, atol=1e-5), (loss1, ref1)

    # Case 2: bf16 wire dtype, multi-tile per core-split (grid = (2, 2)); exercises
    # the SMEM accumulation across the "arbitrary" axis and the per-split partials.
    B2, C2 = 64, 128
    y_pred2 = jax.random.normal(k3, (B2, C2), dtype=jnp.float32).astype(jnp.bfloat16)
    y_true2 = jax.random.randint(k4, (B2,), 0, C2, dtype=jnp.int32)
    loss2 = rdrop_loss(y_pred2, y_true2, block_rows=16)
    jax.block_until_ready(loss2)
    ref2 = rdrop_loss_ref(y_pred2, y_true2)
    assert jnp.allclose(loss2, ref2, rtol=1e-5, atol=1e-5), (loss2, ref2)

    print("KERNEL_OK")
</pallas_src>

<mosaic_0001>
module attributes {stable_mosaic.version = 11 : i64} {
  func.func @_rdrop_kernel(%arg0: i32, %arg1: i32, %arg2: memref<16x32xf32, #tpu.memory_space<vmem>>, %arg3: memref<16x1xi32, #tpu.memory_space<vmem>>, %arg4: memref<8x128xf32, #tpu.memory_space<vmem>>, %arg5: memref<1xf32, #tpu.memory_space<smem>>) attributes {dimension_semantics = [#tpu.dimension_semantics<parallel>, #tpu.dimension_semantics<arbitrary>], iteration_bounds = array<i64: 2, 1>, scalar_prefetch = 0 : i64, scratch_operands = 1 : i64, tpu.core_type = #tpu.core_type<tc>, window_params = [{transform_indices = @transform_0, window_bounds = array<i64: 16, 32>}, {transform_indices = @transform_1, window_bounds = array<i64: 16, 1>}, {transform_indices = @transform_2, window_bounds = array<i64: 8, 128>}]} {
    %c0_i32 = arith.constant 0 : i32
    %0 = arith.cmpi eq, %arg1, %c0_i32 : i32
    %1 = arith.extui %0 : i1 to i32
    %c0_i32_0 = arith.constant 0 : i32
    %2 = arith.cmpi ne, %1, %c0_i32_0 : i32
    scf.if %2 {
      %cst_17 = arith.constant 0.000000e+00 : f32
      %c0_18 = arith.constant 0 : index
      %56 = memref.load %arg5[%c0_18] : memref<1xf32, #tpu.memory_space<smem>>
      memref.store %cst_17, %arg5[%c0_18] : memref<1xf32, #tpu.memory_space<smem>>
    } else {
    }
    %c0 = arith.constant 0 : index
    %c0_1 = arith.constant 0 : index
    %3 = vector.load %arg2[%c0, %c0_1] : memref<16x32xf32, #tpu.memory_space<vmem>>, vector<16x32xf32>
    %c0_2 = arith.constant 0 : index
    %c0_3 = arith.constant 0 : index
    %4 = vector.load %arg3[%c0_2, %c0_3] : memref<16x1xi32, #tpu.memory_space<vmem>>, vector<16x1xi32>
    %cst = arith.constant dense<0xFF800000> : vector<16xf32>
    %5 = vector.multi_reduction <maximumf>, %3, %cst [1] : vector<16x32xf32> to vector<16xf32>
    %6 = vector.shape_cast %5 : vector<16xf32> to vector<16x1xf32>
    %7 = vector.broadcast %6 : vector<16x1xf32> to vector<16x32xf32>
    %8 = arith.subf %3, %7 : vector<16x32xf32>
    %9 = math.exp %8 : vector<16x32xf32>
    %cst_4 = arith.constant dense<0.000000e+00> : vector<16xf32>
    %10 = vector.multi_reduction <add>, %9, %cst_4 [1] : vector<16x32xf32> to vector<16xf32>
    %11 = vector.shape_cast %10 : vector<16xf32> to vector<16x1xf32>
    %12 = math.log %11 : vector<16x1xf32>
    %13 = vector.broadcast %12 : vector<16x1xf32> to vector<16x32xf32>
    %14 = arith.subf %8, %13 : vector<16x32xf32>
    %15 = tpu.reciprocal %11 : vector<16x1xf32> -> vector<16x1xf32>
    %16 = vector.broadcast %15 : vector<16x1xf32> to vector<16x32xf32>
    %17 = arith.mulf %9, %16 : vector<16x32xf32>
    %18 = tpu.iota {dimensions = array<i32: 1>} : vector<16x32xi32>
    %19 = vector.broadcast %4 : vector<16x1xi32> to vector<16x32xi32>
    %20 = arith.cmpi eq, %18, %19 : vector<16x32xi32>
    %cst_5 = arith.constant 0.000000e+00 : f32
    %21 = vector.broadcast %cst_5 : f32 to vector<16x32xf32>
    %22 = arith.select %20, %14, %21 : vector<16x32xi1>, vector<16x32xf32>
    %cst_6 = arith.constant -1.250000e-01 : f32
    %23 = vector.broadcast %cst_6 : f32 to vector<16x32xf32>
    %24 = arith.mulf %22, %23 : vector<16x32xf32>
    %c15_i32 = arith.constant 15 : i32
    %25 = tpu.dynamic_rotate %17 by %c15_i32 dim 0 : vector<16x32xf32>, i32 -> vector<16x32xf32>
    %c15_i32_7 = arith.constant 15 : i32
    %26 = tpu.dynamic_rotate %14 by %c15_i32_7 dim 0 : vector<16x32xf32>, i32 -> vector<16x32xf32>
    %27 = tpu.iota {dimensions = array<i32: 0>} : vector<16x1xi32>
    %c15_i32_8 = arith.constant 15 : i32
    %28 = tpu.dynamic_rotate %27 by %c15_i32_8 dim 0 : vector<16x1xi32>, i32 -> vector<16x1xi32>
    %c1_i32 = arith.constant 1 : i32
    %29 = vector.broadcast %c1_i32 : i32 to vector<16x1xi32>
    %30 = arith.addi %27, %29 : vector<16x1xi32>
    %c1_i32_9 = arith.constant 1 : i32
    %31 = vector.broadcast %c1_i32_9 : i32 to vector<16x1xi32>
    %32 = arith.andi %27, %31 : vector<16x1xi32>
    %c2_i32 = arith.constant 2 : i32
    %33 = vector.broadcast %c2_i32 : i32 to vector<16x1xi32>
    %34 = arith.muli %33, %32 : vector<16x1xi32>
    %35 = arith.subi %30, %34 : vector<16x1xi32>
    %36 = arith.cmpi eq, %28, %35 : vector<16x1xi32>
    %cst_10 = arith.constant 7.812500e-03 : f32
    %cst_11 = arith.constant 0.000000e+00 : f32
    %37 = vector.broadcast %cst_10 : f32 to vector<16x1xf32>
    %38 = vector.broadcast %cst_11 : f32 to vector<16x1xf32>
    %39 = arith.select %36, %37, %38 : vector<16x1xi1>, vector<16x1xf32>
    %40 = arith.subf %17, %25 : vector<16x32xf32>
    %41 = arith.subf %14, %26 : vector<16x32xf32>
    %42 = arith.mulf %40, %41 : vector<16x32xf32>
    %43 = vector.broadcast %39 : vector<16x1xf32> to vector<16x32xf32>
    %44 = arith.mulf %43, %42 : vector<16x32xf32>
    %c0_12 = arith.constant 0 : index
    %45 = memref.load %arg5[%c0_12] : memref<1xf32, #tpu.memory_space<smem>>
    %46 = arith.addf %24, %44 : vector<16x32xf32>
    %47 = vector.shape_cast %46 : vector<16x32xf32> to vector<1x16x32xf32>
    %cst_13 = arith.constant dense<0.000000e+00> : vector<1xf32>
    %48 = vector.multi_reduction <add>, %47, %cst_13 [1, 2] : vector<1x16x32xf32> to vector<1xf32>
    %49 = vector.shape_cast %48 : vector<1xf32> to vector<1x1x1xf32>
    %50 = vector.extract %49[0, 0, 0] : f32 from vector<1x1x1xf32>
    %51 = arith.addf %45, %50 : f32
    %c0_14 = arith.constant 0 : index
    %52 = memref.load %arg5[%c0_14] : memref<1xf32, #tpu.memory_space<smem>>
    memref.store %51, %arg5[%c0_14] : memref<1xf32, #tpu.memory_space<smem>>
    %c0_i32_15 = arith.constant 0 : i32
    %53 = arith.cmpi eq, %arg1, %c0_i32_15 : i32
    %54 = arith.extui %53 : i1 to i32
    %c0_i32_16 = arith.constant 0 : i32
    %55 = arith.cmpi ne, %54, %c0_i32_16 : i32
    scf.if %55 {
      %c0_17 = arith.constant 0 : index
      %56 = memref.load %arg5[%c0_17] : memref<1xf32, #tpu.memory_space<smem>>
      %57 = vector.broadcast %56 : f32 to vector<8x128xf32>
      %c0_18 = arith.constant 0 : index
      %c0_19 = arith.constant 0 : index
      %58 = vector.load %arg4[%c0_18, %c0_19] : memref<8x128xf32, #tpu.memory_space<vmem>>, vector<8x128xf32>
      tpu.vector_store %arg4[%c0_18, %c0_19], %57 {strides = array<i32>} : memref<8x128xf32, #tpu.memory_space<vmem>>, vector<8x128xf32>,
    } else {
    }
    return
  }
  func.func @transform_0(%arg0: i32, %arg1: i32) -> (i32, i32) {
    %c1_i32 = arith.constant 1 : i32
    %0 = arith.muli %arg0, %c1_i32 : i32
    %1 = arith.addi %0, %arg1 : i32
    %c0_i32 = arith.constant 0 : i32
    %c0_i32_0 = arith.constant 0 : i32
    return %1, %c0_i32 : i32, i32
  }
  func.func @transform_1(%arg0: i32, %arg1: i32) -> (i32, i32) {
    %c1_i32 = arith.constant 1 : i32
    %0 = arith.muli %arg0, %c1_i32 : i32
    %1 = arith.addi %0, %arg1 : i32
    %c0_i32 = arith.constant 0 : i32
    %c0_i32_0 = arith.constant 0 : i32
    return %1, %c0_i32 : i32, i32
  }
  func.func @transform_2(%arg0: i32, %arg1: i32) -> (i32, i32) {
    %c0_i32 = arith.constant 0 : i32
    %c0_i32_0 = arith.constant 0 : i32
    return %arg0, %c0_i32 : i32, i32
  }
}

</mosaic_0001>

<llo_original>
// kernel: tpu_custom_call.1
$region0: #{tpu_custom_call.1}
  #allocation0 [shape = 'u32[]', space=smem, size = 0x4, offset = 0x4, fixed_abs, tag = 'smem constant byte address 0x4 - core index']
  #allocation1 [shape = 'u32[144,128]{1,0:T(1,128)}', space=vmem, size = 0x12000, scoped, tag = 'internal scratch']
  #allocation2 [shape = 'f32[1]{0:T(128)}', space=smem, size = 0x200, scoped, tag = 'scratch operand']
  %s0 = inlined_call_operand.vmem [shape: f32[32,32], index: 0, kind: input, shape index: {}]
  %s1 = inlined_call_operand.vmem [shape: s32[32,1], index: 1, kind: input, shape index: {}]
  %s2 = inlined_call_operand.hbm [shape: f32[16,128], index: 2, kind: output, shape index: {}]
  %s3 = sld [smem:[#allocation0]]
  $region49: #{tpu_custom_call.1} parent=0
    _
  %s5 = ssub.s32 1, %s3
  %s6 = scalar_select 0, %s5, %s3
  $region1: #{tpu_custom_call.1} parent=0
    #allocation3 [shape = 'u8[8192]{0}', space=vmem, size = 0x2000, scoped, tag = 'output window, operand 0']
    #allocation4 [shape = 's32[2]{0}', space=sflag, size = 0x8, scoped, tag = 'scoped memory for tpu_custom_call.1']
    %7 = vsyncpa [#allocation4], 0
    %s8 = scalar_lea.sflag [#allocation4], 1
    %9 = vsyncpa %s8, 0
    loop: start=0, step=1, limit=4
    $region2: #{tpu_custom_call.1} parent=1 // loop_pre_header
      _
    $region3: #{tpu_custom_call.1} parent=1 // loop_header
      %s11 = sphi 0, %s15
      %p12 = scmp.ge.s32.totalorder %s11, 4
      %s18 = sphi 0, %s30
      %s19 = sphi 0, %s26
      %s20 = sphi 0, %s18
      %s21 = sphi 0, %s19
      %s22 = sphi 0, %s20
      %s23 = sphi 0, %s21
      %s35 = sphi 0, %s37
      %s38 = sphi 0, %s35
      %s39 = sphi 0, %s38
      %s55 = sphi 0, %s39
      %s63 = sphi 0, %s65
      %s66 = sphi 0, %s63
      %s67 = sphi 0, %s66
      %s83 = sphi 0, %s67
      %s89 = sphi 0, %s91
      %s92 = sphi 0, %s89
      %s93 = sphi 0, %s92
      %s109 = sphi 0, %s93
    $region4: #{tpu_custom_call.1} parent=1 // loop_header_branch
      %14 = sbr.rel (%p12) target = $region8
    $region5: #{tpu_custom_call.1} parent=1 // loop_body
      %s16 = ssub.s32 %s11, 1
      %s17 = ssub.s32 %s11, 2
      %s24 = sadd.s32 1, %s19
      %p25 = scmp.ge.s32.totalorder %s24, 1
      %s26 = scalar_select %p25, 0, %s24
      %s27 = sadd.s32 1, %s18
      %s28 = scalar_select %p25, %s27, %s18
      %p29 = scmp.ge.s32.totalorder %s28, 2
      %s30 = scalar_select %p29, 0, %s28
      %s31 = sadd.s32 %s18, %s19
      %s32 = sadd.s32 %s30, %s26
      %s33 = ssub.s32 %s31, %s32
      %p34 = scmp.eq.s32.totalorder %s33, 0
      %s36 = sadd.s32 %s35, 1
      %s37 = scalar_select %p34, %s35, %s36
      %p40 = pneg %p34
      %p41 = scmp.eq.s32.totalorder %s11, 1
      %p42 = por %p40, %p41
      %p43 = scmp.ne.s32.totalorder %s35, %s38
      %p44 = scmp.eq.s32.totalorder %s11, 0
      %p45 = por %p43, %p44
      %p46 = scmp.ne.s32.totalorder %s35, %s38
      %p47 = scmp.eq.s32.totalorder %s16, 1
      %p48 = por %p46, %p47
      %p49 = scmp.ne.s32.totalorder %s38, %s39
      %p50 = scmp.eq.s32.totalorder %s16, 0
      %p51 = por %p49, %p50
      %p52 = scmp.ne.s32.totalorder %s38, %s39
      %p53 = scmp.eq.s32.totalorder %s17, 1
      %p54 = por %p52, %p53
      %p56 = scmp.ne.s32.totalorder %s39, %s55
      %p57 = scmp.eq.s32.totalorder %s17, 0
      %p58 = por %p56, %p57
      %s59 = sadd.s32 %s18, %s19
      %s60 = sadd.s32 %s30, %s26
      %s61 = ssub.s32 %s59, %s60
      %p62 = scmp.eq.s32.totalorder %s61, 0
      %s64 = sadd.s32 %s63, 1
      %s65 = scalar_select %p62, %s63, %s64
      %p68 = pneg %p62
      %p69 = scmp.eq.s32.totalorder %s11, 1
      %p70 = por %p68, %p69
      %p71 = scmp.ne.s32.totalorder %s63, %s66
      %p72 = scmp.eq.s32.totalorder %s11, 0
      %p73 = por %p71, %p72
      %p74 = scmp.ne.s32.totalorder %s63, %s66
      %p75 = scmp.eq.s32.totalorder %s16, 1
      %p76 = por %p74, %p75
      %p77 = scmp.ne.s32.totalorder %s66, %s67
      %p78 = scmp.eq.s32.totalorder %s16, 0
      %p79 = por %p77, %p78
      %p80 = scmp.ne.s32.totalorder %s66, %s67
      %p81 = scmp.eq.s32.totalorder %s17, 1
      %p82 = por %p80, %p81
      %p84 = scmp.ne.s32.totalorder %s67, %s83
      %p85 = scmp.eq.s32.totalorder %s17, 0
      %p86 = por %p84, %p85
      %s87 = ssub.s32 %s18, %s30
      %p88 = scmp.eq.s32.totalorder %s87, 0
      %s90 = sadd.s32 %s89, 1
      %s91 = scalar_select %p88, %s89, %s90
      %p94 = pneg %p88
      %p95 = scmp.eq.s32.totalorder %s11, 1
      %p96 = por %p94, %p95
      %p97 = scmp.ne.s32.totalorder %s89, %s92
      %p98 = scmp.eq.s32.totalorder %s11, 0
      %p99 = por %p97, %p98
      %p100 = scmp.ne.s32.totalorder %s89, %s92
      %p101 = scmp.eq.s32.totalorder %s16, 1
      %p102 = por %p100, %p101
      %p103 = scmp.ne.s32.totalorder %s92, %s93
      %p104 = scmp.eq.s32.totalorder %s16, 0
      %p105 = por %p103, %p104
      %p106 = scmp.ne.s32.totalorder %s92, %s93
      %p107 = scmp.eq.s32.totalorder %s17, 1
      %p108 = por %p106, %p107
      %p110 = scmp.ne.s32.totalorder %s93, %s109
      %p111 = scmp.eq.s32.totalorder %s17, 0
      %p112 = por %p110, %p111
      %p113 = scmp.le.s32.totalorder 1, %s11
      %p114 = scmp.lt.s32.totalorder %s11, 3
      %p115 = pnand %p113, %p114
      %p116 = pneg %p115
      // Predicated region
      $region9: #{tpu_custom_call.1} parent=5 // pred_check
        _
      $region10: #{tpu_custom_call.1} parent=5 // pred_check_branch
        %118 = sbr.rel (%p115) target = $region12
      $region11: #{tpu_custom_call.1} parent=5 // pred_region
        %s119 = ssub.s32 %s11, 1
      $region12: #{tpu_custom_call.1} parent=5 // pred_fallthru
        _
      %p120 = scmp.lt.s32.totalorder %s11, 2
      // Predicated region
      $region13: #{tpu_custom_call.1} parent=5 // pred_check
        %p121 = pneg %p120
      $region14: #{tpu_custom_call.1} parent=5 // pred_check_branch
        %123 = sbr.rel (%p121) target = $region16
      $region15: #{tpu_custom_call.1} parent=5 // pred_region
        // Predicated region
        $region17: #{tpu_custom_call.1} parent=15 // pred_check
          %p124 = pneg %p45
        $region18: #{tpu_custom_call.1} parent=15 // pred_check_branch
          %126 = sbr.rel (%p124) target = $region20
        $region19: #{tpu_custom_call.1} parent=15 // pred_region
          %s127 = sadd.s32 %s18, %s19
          %s128 = smul.u32 2, %s127
          %p129 = scmp.lt.s32.totalorder %s128, 3
          %s130 = scalar_select %p129, %s128, 3
          %s131 = smul.addr %s130, 8
          %s132 = scalar_lea.vmem %s0, %s131
          %s133 = sadd.s32 %s18, %s19
          %s134 = smul.u32 2, %s133
        $region20: #{tpu_custom_call.1} parent=15 // pred_fallthru
          _
        // Predicated region
        $region21: #{tpu_custom_call.1} parent=15 // pred_check
          %p135 = pneg %p73
        $region22: #{tpu_custom_call.1} parent=15 // pred_check_branch
          %137 = sbr.rel (%p135) target = $region24
        $region23: #{tpu_custom_call.1} parent=15 // pred_region
          %s138 = sadd.s32 %s18, %s19
          %s139 = smul.u32 2, %s138
          %p140 = scmp.lt.s32.totalorder %s139, 3
          %s141 = scalar_select %p140, %s139, 3
          %s142 = smul.addr %s141, 8
          %s143 = scalar_lea.vmem %s1, %s142
          %s144 = sadd.s32 %s18, %s19
          %s145 = smul.u32 2, %s144
        $region24: #{tpu_custom_call.1} parent=15 // pred_fallthru
          _
      $region16: #{tpu_custom_call.1} parent=5 // pred_fallthru
        _
      %p146 = scmp.le.s32.totalorder 1, %s11
      %p147 = scmp.lt.s32.totalorder %s11, 3
      %p148 = pnand %p146, %p147
      %p149 = pneg %p148
      // Predicated region
      $region25: #{tpu_custom_call.1} parent=5 // pred_check
        _
      $region26: #{tpu_custom_call.1} parent=5 // pred_check_branch
        %151 = sbr.rel (%p148) target = $region28
      $region27: #{tpu_custom_call.1} parent=5 // pred_region
        %s152 = ssub.s32 %s11, 1
        %s153 = sadd.s32 %s20, %s21
        %s154 = smul.u32 2, %s153
        %p155 = scmp.lt.s32.totalorder %s154, 3
        %s156 = scalar_select %p155, %s154, 3
        %s157 = smul.addr %s156, 8
        %s158 = scalar_lea.vmem %s0, %s157
        %p159 = pneg %p51
        %p160 = pneg %p48
        %s161 = sadd.s32 %s20, %s21
        %s162 = smul.u32 2, %s161
        %p163 = scmp.lt.s32.totalorder %s162, 3
        %s164 = scalar_select %p163, %s162, 3
        %s165 = smul.addr %s164, 8
        %s166 = scalar_lea.vmem %s1, %s165
        %p167 = pneg %p79
        %p168 = pneg %p76
        %p169 = pneg %p105
        %p170 = pneg %p102
        %s171 = sand.u32 %s92, 1
        %s172 = scalar_lea.sflag [#allocation4], %s171
        %s173 = sand.u32 %s92, 1
        %s174 = smul.addr %s173, 8
        %s175 = scalar_lea.vmem [#allocation3], %s174
        %s176 = sadd.s32 %s20, %s21
        %s177 = smul.u32 2, %s176
        %p178 = scmp.lt.s32.totalorder %s177, 3
        %s179 = scalar_select %p178, %s177, 3
        %s180 = smul.addr %s179, 8
        %s181 = scalar_lea.vmem %s0, %s180
        %s182 = sadd.s32 %s20, %s21
        %s183 = smul.u32 2, %s182
        %s184 = sadd.s32 %s20, %s21
        %s185 = smul.u32 2, %s184
        %p186 = scmp.lt.s32.totalorder %s185, 3
        %s187 = scalar_select %p186, %s185, 3
        %s188 = smul.addr %s187, 8
        %s189 = scalar_lea.vmem %s1, %s188
        %s190 = sadd.s32 %s20, %s21
        %s191 = smul.u32 2, %s190
        %p192 = scmp.eq.s32.totalorder %s21, 0
        // Predicated region
        $region29: #{tpu_custom_call.1} parent=27 // pred_check
          %p193 = pneg %p192
        $region30: #{tpu_custom_call.1} parent=27 // pred_check_branch
          %195 = sbr.rel (%p193) target = $region32
        $region31: #{tpu_custom_call.1} parent=27 // pred_region
          %s196 = scalar_lea.smem [#allocation2], 0
          %197 = sst [smem:[%s196]] 0.0
        $region32: #{tpu_custom_call.1} parent=27 // pred_fallthru
          _
        %v198 = vld [vmem:[%s181] sm:$0xff]
        %v199 = vld [vmem:[%s181 + $0x8] sm:$0xff]
        %v200 = vld [vmem:[%s189] sm:$0xff]
        %v201 = vld [vmem:[%s189 + $0x8] sm:$0xff]
        %vm202 = vcmask 261120
        %v203 = vsel %vm202, %v198, -inf
        %204 = vmax.xlane.f32.xlu0 %v203
        %v205 = vpop.xlane.xlu0 %204
        %v206 = vsel %vm202, %v199, -inf
        %207 = vmax.xlane.f32.xlu0 %v206
        %v208 = vpop.xlane.xlu0 %207
        %v209 = vsub.f32 %v198, %v205
        %v210 = vsub.f32 %v199, %v208
        %v211 = vmul.f32 %v209, 1.442695
        %v212 = vpow.pop %v211
        %v213 = vmul.f32 %v210, 1.442695
        %v214 = vpow.pop %v213
        %v215 = vsel %vm202, %v212, 0.0
        %216 = vadd.xlane.f32.xlu0 %v215
        %v217 = vpop.xlane.xlu0 %216
        %v218 = vsel %vm202, %v214, 0.0
        %219 = vadd.xlane.f32.xlu0 %v218
        %v220 = vpop.xlane.xlu0 %219
        %v221 = vlog2.pop %v217
        %v222 = vmul.f32 %v221, 0.6931472
        %v223 = vlog2.pop %v220
        %v224 = vmul.f32 %v223, 0.6931472
        %v225 = vsub.f32 %v209, %v222
        %v226 = vsub.f32 %v210, %v224
        %v227 = vrcp.pop %v217
        %v228 = vrcp.pop %v220
        %v229 = vmul.f32 %v212, %v227
        %v230 = vmul.f32 %v214, %v228
        %v231 = vlaneseq
        %v232 = vand.u32 %v231, 127
        %233 = vset.pattern.permute.xlu0 0
        %234 = vperm.xlu0 %233, %v200
        %v235 = vpop.permute.xlu0 %234
        %236 = vset.pattern.permute.xlu0 0
        %237 = vperm.xlu0 %236, %v201
        %v238 = vpop.permute.xlu0 %237
        %vm239 = vcmp.eq.s32.totalorder %v232, %v235
        %vm240 = vcmp.eq.s32.totalorder %v232, %v238
        %v241 = vsel %vm239, %v225, 0.0
        %v242 = vsel %vm240, %v226, 0.0
        %v243 = vmul.f32 %v241, -0.125
        %v244 = vmul.f32 %v242, -0.125
        %v245 = vrot.slane %v229, 1
        %v246 = vrot.slane %v230, 1
        %v247 = vlaneseq
        %v248 = vshrl.u32 %v247, 7
        %vm249 = vcmp.lt.s32.totalorder %v248, 7
        %v250 = vsel %vm249, %v245, %v246
        %v251 = vsel %vm249, %v246, %v245
        %v252 = vrot.slane %v225, 1
        %v253 = vrot.slane %v226, 1
        %v254 = vsel %vm249, %v252, %v253
        %v255 = vsel %vm249, %v253, %v252
        %v256 = vadd.s32 %v248, 8
        %v257 = vrot.slane %v248, 1
        %v258 = vrot.slane %v256, 1
        %v259 = vsel %vm249, %v257, %v258
        %v260 = vsel %vm249, %v258, %v257
        %v261 = vadd.s32 %v248, 1
        %v262 = vadd.s32 %v256, 1
        %v263 = vand.u32 %v248, 1
        %v264 = vand.u32 %v256, 1
        %v265 = vmul.u32 %v263, 2
        %v266 = vmul.u32 %v264, 2
        %v267 = vsub.s32 %v261, %v265
        %v268 = vsub.s32 %v262, %v266
        %vm269 = vcmp.eq.s32.totalorder %v259, %v267
        %vm270 = vcmp.eq.s32.totalorder %v260, %v268
        %v271 = vsel %vm269, 0.0078125, 0.0
        %v272 = vsel %vm270, 0.0078125, 0.0
        %v273 = vsub.f32 %v229, %v250
        %v274 = vsub.f32 %v230, %v251
        %v275 = vsub.f32 %v225, %v254
        %v276 = vsub.f32 %v226, %v255
        %v277 = vmul.f32 %v273, %v275
        %v278 = vmul.f32 %v274, %v276
        %280 = vset.pattern.permute.xlu0 0
        %281 = vperm.xlu0 %280, %v271
        %v282 = vpop.permute.xlu0 %281
        %285 = vset.pattern.permute.xlu0 0
        %286 = vperm.xlu0 %285, %v272
        %v287 = vpop.permute.xlu0 %286
        %v289 = vmul.f32 %v282, %v277
        %v290 = vmul.f32 %v287, %v278
        %s291 = sld [smem:[#allocation2]]
        %v292 = vadd.f32 %v243, %v289
        %v293 = vadd.f32 %v244, %v290
        %v294 = vsel %vm202, %v292, 0.0
        %v295 = vsel %vm202, %v293, 0.0
        %v296 = vadd.f32 %v294, %v295
        %297 = vadd.xlane.f32.xlu0 %v296
        %v298 = vpop.xlane.xlu0 %297
        %v299 = vrot.slane %v298, 4
        %v300 = vadd.f32 %v298, %v299
        %v301 = vrot.slane %v300, 2
        %v302 = vadd.f32 %v300, %v301
        %v303 = vrot.slane %v302, 1
        %v304 = vadd.f32 %v302, %v303
        %s305 = vtos %v304
        %s306 = sadd.f32 %s291, %s305
        %s307 = scalar_lea.smem [#allocation2], 0
        %308 = sst [smem:[%s307]] %s306
        // Predicated region
        $region33: #{tpu_custom_call.1} parent=27 // pred_check
          %p309 = pneg %p192
        $region34: #{tpu_custom_call.1} parent=27 // pred_check_branch
          %311 = sbr.rel (%p309) target = $region36
        $region35: #{tpu_custom_call.1} parent=27 // pred_region
          %s312 = sld [smem:[#allocation2]]
          %v313 = vstv %s312
          %314 = vst [vmem:[%s175] sm:$0xff] %v313
        $region36: #{tpu_custom_call.1} parent=27 // pred_fallthru
          _
        %s315 = sand.u32 %s92, 1
        %s316 = scalar_lea.sflag [#allocation4], %s315
        %s317 = sand.u32 %s92, 1
        %s318 = smul.addr %s317, 8
        %s319 = scalar_lea.vmem [#allocation3], %s318
        // Predicated region
        $region37: #{tpu_custom_call.1} parent=27 // pred_check
          %p320 = pneg %p102
        $region38: #{tpu_custom_call.1} parent=27 // pred_check_branch
          %322 = sbr.rel (%p320) target = $region40
        $region39: #{tpu_custom_call.1} parent=27 // pred_region
          %s324 = ssub.s32 128, 128
          %325 = vsyncadd %s316, %s324
          %s326 = smul.addr %s20, 128
          %s327 = scalar_lea.hbm %s2, %s326
          %s329 = sshll.u32 %s319, 4
          %s330 = int_to_ptr.vmem [resolvable:$true] %s329
          %332 = dma.vmem_to_hbm [thread:$0]  %s330, 128, %s327, %s316
        $region40: #{tpu_custom_call.1} parent=27 // pred_fallthru
          _
      $region28: #{tpu_custom_call.1} parent=5 // pred_fallthru
        _
      %p333 = scmp.le.s32.totalorder 2, %s11
      // Predicated region
      $region41: #{tpu_custom_call.1} parent=5 // pred_check
        %p334 = pneg %p333
      $region42: #{tpu_custom_call.1} parent=5 // pred_check_branch
        %336 = sbr.rel (%p334) target = $region44
      $region43: #{tpu_custom_call.1} parent=5 // pred_region
        %s337 = ssub.s32 %s11, 2
        // Predicated region
        $region45: #{tpu_custom_call.1} parent=43 // pred_check
          %p338 = pneg %p108
        $region46: #{tpu_custom_call.1} parent=43 // pred_check_branch
          %340 = sbr.rel (%p338) target = $region48
        $region47: #{tpu_custom_call.1} parent=43 // pred_region
          %s341 = sand.u32 %s93, 1
          %s342 = scalar_lea.sflag [#allocation4], %s341
          %s343 = sand.u32 %s93, 1
          %s344 = smul.addr %s343, 8
          %s345 = scalar_lea.vmem [#allocation3], %s344
          %346 = dma.done %s342, 128
        $region48: #{tpu_custom_call.1} parent=43 // pred_fallthru
          _
      $region44: #{tpu_custom_call.1} parent=5 // pred_fallthru
        _
    $region6: #{tpu_custom_call.1} parent=1 // loop_footer
      %s15 = sadd.s32 1, %s11
    $region7: #{tpu_custom_call.1} parent=1 // loop_footer_branch
      %10 = sbr.rel target = $region3
    $region8: #{tpu_custom_call.1} parent=1 // loop_exit
      _
    %347 = vsyncpa [#allocation4], 1
    %s348 = scalar_lea.sflag [#allocation4], 1
    %349 = vsyncpa %s348, 1

</llo_original>
